<compile_context>
chip_gen: v6e
topology: v6e:2x2x1
jax: 0.10.0
libtpu: 0.0.40
codegen_flags: <defaults>
</compile_context>

<pallas_src>
import jax
import jax.numpy as jnp
from jax.experimental import pallas as pl
from jax.experimental.pallas import tpu as pltpu

LN_EPS = 1e-12  # ViltConfig.layer_norm_eps default


# ---------------------------------------------------------------------------
# Pallas kernels
# ---------------------------------------------------------------------------
def _text_embed_kernel(we_ref, tte_ref, pe_ref, gamma_ref, beta_ref, out_ref):
    """word_emb + token_type_emb + pos_emb -> LayerNorm (beta already includes modality-0)."""
    x = we_ref[...] + tte_ref[...] + pe_ref[...][None, :, :]            # (bt, T, D)
    mean = jnp.mean(x, axis=-1, keepdims=True)
    xc = x - mean
    var = jnp.mean(xc * xc, axis=-1, keepdims=True)
    xn = xc * jax.lax.rsqrt(var + LN_EPS)
    out_ref[...] = xn * gamma_ref[...][None, :, :] + beta_ref[...][None, :, :]


def _make_visual_kernel(set_size, P):
    """Tiled patch-projection matmul; additive constants folded into acc init;
    epilogue stores cls row + P projected patch rows directly (no concatenate)."""
    P1 = P + 1

    def kernel(patch_ref, w_ref, addend_ref, cls_ref, out_ref, acc_ref):
        k = pl.program_id(1)

        @pl.when(k == 0)
        def _():
            # Accumulator starts at the precombined additive constants
            # (conv bias + modality-1 + patch pos-emb + img-level pos-emb).
            acc_ref[...] = addend_ref[...]

        # bf16 x bf16 -> f32 accumulation on the MXU.
        acc_ref[...] += jnp.dot(patch_ref[...], w_ref[...],
                                preferred_element_type=jnp.float32)

        @pl.when(k == pl.num_programs(1) - 1)
        def _():
            for s in range(set_size):                                    # static unroll (small set_size)
                out_ref[s * P1:s * P1 + 1, :] = cls_ref[s:s + 1, :]      # cls row
                out_ref[s * P1 + 1:(s + 1) * P1, :] = acc_ref[s * P:(s + 1) * P, :]

    return kernel


# ---------------------------------------------------------------------------
# Wrappers around pallas_call
# ---------------------------------------------------------------------------
def text_embeddings_pallas(we, tte, pe, gamma, beta_plus_mod0):
    B, T, D = we.shape
    # Block several batch elements per grid step (bigger tiles, fewer steps).
    bt = max(1, min(B, 512 // max(T, 1)))
    while B % bt:
        bt -= 1
    return pl.pallas_call(
        _text_embed_kernel,
        out_shape=jax.ShapeDtypeStruct((B, T, D), jnp.float32),
        grid=(B // bt,),
        in_specs=[
            pl.BlockSpec((bt, T, D), lambda i: (i, 0, 0)),
            pl.BlockSpec((bt, T, D), lambda i: (i, 0, 0)),
            pl.BlockSpec((T, D), lambda i: (0, 0)),
            pl.BlockSpec((1, D), lambda i: (0, 0)),
            pl.BlockSpec((1, D), lambda i: (0, 0)),
        ],
        out_specs=pl.BlockSpec((bt, T, D), lambda i: (i, 0, 0)),
        compiler_params=pltpu.CompilerParams(
            dimension_semantics=("parallel",),
            vmem_limit_bytes=64 * 1024 * 1024),
    )(we, tte, pe, gamma, beta_plus_mod0)


def visual_embeddings_pallas(patches_2d, w_mat, addend, cls_rows, *, B, set_size, P, D):
    M, K = patches_2d.shape                   # M = B * set_size * P
    SP = set_size * P                         # rows per batch element (M tile)
    P1 = P + 1
    SP1 = set_size * P1
    assert M == B * SP
    assert SP % 8 == 0 or B == 1, (
        "set_size * num_patches must be a multiple of 8 (sublane) to tile per batch")

    # Contraction tile (trailing 'arbitrary' grid axis).
    tk = K
    for cand in (512, 384, 256, 128):
        if K % cand == 0:
            tk = cand
            break
    kt = K // tk

    kernel = _make_visual_kernel(set_size, P)
    return pl.pallas_call(
        kernel,
        out_shape=jax.ShapeDtypeStruct((B, SP1, D), jnp.float32),
        grid=(B, kt),
        in_specs=[
            pl.BlockSpec((SP, tk), lambda b, k: (b, k)),       # patches (bf16)
            pl.BlockSpec((tk, D), lambda b, k: (k, 0)),        # weight tile (bf16)
            pl.BlockSpec((SP, D), lambda b, k: (0, 0)),        # precombined addend (grid-invariant)
            pl.BlockSpec((set_size, D), lambda b, k: (0, 0)),  # precombined cls rows (grid-invariant)
        ],
        out_specs=pl.BlockSpec((None, SP1, D), lambda b, k: (b, 0, 0)),
        scratch_shapes=[pltpu.VMEM((SP, D), jnp.float32)],
        compiler_params=pltpu.CompilerParams(
            dimension_semantics=("parallel", "arbitrary"),
            vmem_limit_bytes=64 * 1024 * 1024),
    )(patches_2d, w_mat, addend, cls_rows)


# ---------------------------------------------------------------------------
# Parameter init (deterministic, synthetic — mirrors the module's __init__ shapes)
# ---------------------------------------------------------------------------
def init_params(key, *, vocab, max_pos, emb_dim, channels, patch, num_patches_p1, set_size):
    ks = jax.random.split(key, 8)
    s = 0.02
    D = emb_dim
    return dict(
        word_emb=s * jax.random.normal(ks[0], (vocab, D), jnp.float32),
        txt_pos_emb=s * jax.random.normal(ks[1], (max_pos, D), jnp.float32),
        txt_type_emb=s * jax.random.normal(ks[2], (2, D), jnp.float32),
        ln_gamma=jnp.ones((1, D), jnp.float32),
        ln_beta=jnp.zeros((1, D), jnp.float32),
        mod_type_emb=s * jax.random.normal(ks[3], (2, D), jnp.float32),      # ViltEmbeddings.token_type_embeddings
        conv_w=s * jax.random.normal(ks[4], (D, channels, patch, patch), jnp.float32),
        conv_b=s * jax.random.normal(ks[5], (D,), jnp.float32),
        vis_pos_emb=s * jax.random.normal(ks[6], (num_patches_p1, D), jnp.float32),
        cls_token=s * jax.random.normal(ks[7], (1, D), jnp.float32),
        img_pos_emb=jnp.zeros((set_size, num_patches_p1, D), jnp.float32),   # nn.Parameter(torch.zeros(...))
    )


# ---------------------------------------------------------------------------
# Forward (ViltSetEmbeddings.forward equivalent)
# ---------------------------------------------------------------------------
def _extract_patches(pixel_values, patch):
    """im2col: (B, set, C, H, W) -> (B*set*P, C*patch*patch), row-major over (Hp, Wp)."""
    B, set_size, C, H, W = pixel_values.shape
    Hp, Wp = H // patch, W // patch
    x = pixel_values.reshape(B * set_size, C, Hp, patch, Wp, patch)
    x = x.transpose(0, 2, 4, 1, 3, 5)                        # (B*set, Hp, Wp, C, ph, pw)
    return x.reshape(B * set_size * Hp * Wp, C * patch * patch)


def vilt_set_embeddings_forward(params, input_ids, attention_mask, token_type_ids,
                                pixel_values, pixel_mask, patch):
    B, T = input_ids.shape
    _, set_size, C, H, W = pixel_values.shape
    D = params["word_emb"].shape[1]
    Hp, Wp = H // patch, W // patch
    P = Hp * Wp
    P1 = P + 1
    K = C * patch * patch

    # ---- text path (gathers = glue; add + LayerNorm in kernel, modality-0 folded into beta)
    # TODO(synk): optionally fuse the embedding gathers via PrefetchScalarGridSpec +
    #             pl.Element row gathers to avoid materializing we/tte in HBM.
    we = params["word_emb"][input_ids]                        # (B, T, D)
    tte = params["txt_type_emb"][token_type_ids]              # (B, T, D)
    pe = params["txt_pos_emb"][:T]                            # (T, D)
    beta_mod0 = params["ln_beta"] + params["mod_type_emb"][0:1]   # fold post-LN modality-0 add
    text_embeds = text_embeddings_pallas(we, tte, pe, params["ln_gamma"], beta_mod0)

    # ---- visual path
    # TODO(synk): for real-size inputs avoid this XLA-side im2col (full strided HBM
    #             rewrite of the pixels); gather patch rows straight from HBM via
    #             manual DMA / index_map instead.
    patches = _extract_patches(pixel_values, patch).astype(jnp.bfloat16)     # (M, K) bf16
    w_mat = params["conv_w"].reshape(D, K).T.astype(jnp.bfloat16)            # (K, D) bf16

    mod1 = params["mod_type_emb"][1]                          # (D,)
    bias = params["conv_b"]                                   # (D,)
    # Precombined per-(set, patch-row) additive constants — B-independent, tiny.
    addend = (bias[None, None, :] + mod1[None, None, :]
              + params["vis_pos_emb"][None, 1:, :]
              + params["img_pos_emb"][:, 1:, :]).reshape(set_size * P, D).astype(jnp.float32)
    cls_rows = (params["cls_token"][0][None, :] + params["vis_pos_emb"][0][None, :]
                + mod1[None, :] + params["img_pos_emb"][:, 0, :]).astype(jnp.float32)   # (set, D)

    visual_embeds = visual_embeddings_pallas(
        patches, w_mat, addend, cls_rows, B=B, set_size=set_size, P=P, D=D)  # (B, set*P1, D)

    # ---- masks (all-ones pixel_mask => visual mask of ones incl. cls)
    visual_masks = jnp.ones((B, set_size * P1), dtype=attention_mask.dtype)

    embeddings = jnp.concatenate([text_embeds, visual_embeds], axis=1)
    masks = jnp.concatenate([attention_mask, visual_masks], axis=1)
    return embeddings, masks


# ---------------------------------------------------------------------------
# Pure-JAX reference (same simplifications) for a correctness cross-check
# ---------------------------------------------------------------------------
def _reference_forward(params, input_ids, attention_mask, token_type_ids, pixel_values, patch):
    B, T = input_ids.shape
    _, set_size, C, H, W = pixel_values.shape
    D = params["word_emb"].shape[1]
    P = (H // patch) * (W // patch)
    K = C * patch * patch

    x = (params["word_emb"][input_ids] + params["txt_type_emb"][token_type_ids]
         + params["txt_pos_emb"][:T][None])
    mean = x.mean(-1, keepdims=True)
    var = ((x - mean) ** 2).mean(-1, keepdims=True)
    text = (x - mean) / jnp.sqrt(var + LN_EPS) * params["ln_gamma"] + params["ln_beta"]
    text = text + params["mod_type_emb"][0]

    patches = _extract_patches(pixel_values, patch).reshape(B, set_size, P, K)
    w = params["conv_w"].reshape(D, K).T
    proj = jnp.einsum("bspk,kd->bspd", patches, w,
                      preferred_element_type=jnp.float32) + params["conv_b"]
    proj = proj + params["vis_pos_emb"][1:][None, None]
    cls = params["cls_token"][0] + params["vis_pos_emb"][0]
    cls = jnp.broadcast_to(cls, (B, set_size, 1, D))
    vis = jnp.concatenate([cls, proj], axis=2)
    vis = vis + params["mod_type_emb"][1] + params["img_pos_emb"][None]
    vis = vis.reshape(B, set_size * (P + 1), D)

    emb = jnp.concatenate([text, vis], axis=1)
    vmask = jnp.ones((B, set_size * (P + 1)), dtype=attention_mask.dtype)
    return emb, jnp.concatenate([attention_mask, vmask], axis=1)


# ---------------------------------------------------------------------------
if __name__ == "__main__":
    B, SET, C, H, W = 2, 2, 4, 16, 16
    PATCH = 8
    T = 8
    D = 32
    VOCAB = 50
    MAX_POS = 40
    P = (H // PATCH) * (W // PATCH)      # 4 patches per image
    P1 = P + 1                           # + cls  -> per-image seq_len = 5

    key = jax.random.PRNGKey(0)
    kp, k1, k2 = jax.random.split(key, 3)

    params = init_params(kp, vocab=VOCAB, max_pos=MAX_POS, emb_dim=D, channels=C,
                         patch=PATCH, num_patches_p1=P1, set_size=SET)

    input_ids = jax.random.randint(k1, (B, T), 0, VOCAB, dtype=jnp.int32)
    token_type_ids = jnp.zeros((B, T), dtype=jnp.int32)
    attention_mask = jnp.ones((B, T), dtype=jnp.int32)
    pixel_values = jax.random.normal(k2, (B, SET, C, H, W), dtype=jnp.float32)
    pixel_mask = jnp.ones((B, SET, H, W), dtype=jnp.int32)

    embeddings, masks = vilt_set_embeddings_forward(
        params, input_ids, attention_mask, token_type_ids, pixel_values, pixel_mask, PATCH)
    jax.block_until_ready((embeddings, masks))

    assert embeddings.shape == (B, T + SET * P1, D)
    assert masks.shape == (B, T + SET * P1)
    assert bool(jnp.all(jnp.isfinite(embeddings)))

    # Cross-check vs pure-JAX reference (loose tol: visual matmul uses bf16 inputs).
    ref_emb, ref_masks = _reference_forward(
        params, input_ids, attention_mask, token_type_ids, pixel_values, PATCH)
    assert bool(jnp.all(masks == ref_masks))
    assert bool(jnp.max(jnp.abs(embeddings - ref_emb)) < 5e-2)

    print("KERNEL_OK")
</pallas_src>

<mosaic_0001>
module attributes {stable_mosaic.version = 11 : i64} {
  func.func @_text_embed_kernel(%arg0: i32, %arg1: memref<2x8x32xf32, #tpu.memory_space<vmem>>, %arg2: memref<2x8x32xf32, #tpu.memory_space<vmem>>, %arg3: memref<8x32xf32, #tpu.memory_space<vmem>>, %arg4: memref<1x32xf32, #tpu.memory_space<vmem>>, %arg5: memref<1x32xf32, #tpu.memory_space<vmem>>, %arg6: memref<2x8x32xf32, #tpu.memory_space<vmem>>) attributes {dimension_semantics = [#tpu.dimension_semantics<parallel>], iteration_bounds = array<i64: 1>, scalar_prefetch = 0 : i64, scratch_operands = 0 : i64, tpu.core_type = #tpu.core_type<tc>, window_params = [{transform_indices = @transform_0, window_bounds = array<i64: 2, 8, 32>}, {transform_indices = @transform_1, window_bounds = array<i64: 2, 8, 32>}, {pipeline_mode = #tpu.pipeline_mode<synchronous>, transform_indices = @transform_2, window_bounds = array<i64: 8, 32>}, {pipeline_mode = #tpu.pipeline_mode<synchronous>, transform_indices = @transform_3, window_bounds = array<i64: 1, 32>}, {pipeline_mode = #tpu.pipeline_mode<synchronous>, transform_indices = @transform_4, window_bounds = array<i64: 1, 32>}, {transform_indices = @transform_5, window_bounds = array<i64: 2, 8, 32>}]} {
    %c0 = arith.constant 0 : index
    %c0_0 = arith.constant 0 : index
    %c0_1 = arith.constant 0 : index
    %0 = vector.load %arg1[%c0, %c0_0, %c0_1] : memref<2x8x32xf32, #tpu.memory_space<vmem>>, vector<2x8x32xf32>
    %c0_2 = arith.constant 0 : index
    %c0_3 = arith.constant 0 : index
    %c0_4 = arith.constant 0 : index
    %1 = vector.load %arg2[%c0_2, %c0_3, %c0_4] : memref<2x8x32xf32, #tpu.memory_space<vmem>>, vector<2x8x32xf32>
    %2 = arith.addf %0, %1 : vector<2x8x32xf32>
    %c0_5 = arith.constant 0 : index
    %c0_6 = arith.constant 0 : index
    %3 = vector.load %arg3[%c0_5, %c0_6] : memref<8x32xf32, #tpu.memory_space<vmem>>, vector<8x32xf32>
    %4 = vector.shape_cast %3 : vector<8x32xf32> to vector<1x8x32xf32>
    %5 = vector.broadcast %4 : vector<1x8x32xf32> to vector<2x8x32xf32>
    %6 = arith.addf %2, %5 : vector<2x8x32xf32>
    %cst = arith.constant dense<0.000000e+00> : vector<2x8xf32>
    %7 = vector.multi_reduction <add>, %6, %cst [2] : vector<2x8x32xf32> to vector<2x8xf32>
    %8 = vector.shape_cast %7 : vector<2x8xf32> to vector<2x8x1xf32>
    %cst_7 = arith.constant 3.200000e+01 : f32
    %9 = vector.broadcast %cst_7 : f32 to vector<2x8x1xf32>
    %10 = arith.divf %8, %9 : vector<2x8x1xf32>
    %11 = vector.broadcast %10 : vector<2x8x1xf32> to vector<2x8x32xf32>
    %12 = arith.subf %6, %11 : vector<2x8x32xf32>
    %13 = arith.mulf %12, %12 : vector<2x8x32xf32>
    %cst_8 = arith.constant dense<0.000000e+00> : vector<2x8xf32>
    %14 = vector.multi_reduction <add>, %13, %cst_8 [2] : vector<2x8x32xf32> to vector<2x8xf32>
    %15 = vector.shape_cast %14 : vector<2x8xf32> to vector<2x8x1xf32>
    %cst_9 = arith.constant 3.200000e+01 : f32
    %16 = vector.broadcast %cst_9 : f32 to vector<2x8x1xf32>
    %17 = arith.divf %15, %16 : vector<2x8x1xf32>
    %cst_10 = arith.constant 9.99999996E-13 : f32
    %18 = vector.broadcast %cst_10 : f32 to vector<2x8x1xf32>
    %19 = arith.addf %17, %18 : vector<2x8x1xf32>
    %20 = math.rsqrt %19 : vector<2x8x1xf32>
    %21 = vector.broadcast %20 : vector<2x8x1xf32> to vector<2x8x32xf32>
    %22 = arith.mulf %12, %21 : vector<2x8x32xf32>
    %c0_11 = arith.constant 0 : index
    %c0_12 = arith.constant 0 : index
    %23 = vector.load %arg4[%c0_11, %c0_12] : memref<1x32xf32, #tpu.memory_space<vmem>>, vector<1x32xf32>
    %24 = vector.shape_cast %23 : vector<1x32xf32> to vector<1x1x32xf32>
    %25 = vector.broadcast %24 : vector<1x1x32xf32> to vector<2x8x32xf32>
    %26 = arith.mulf %22, %25 : vector<2x8x32xf32>
    %c0_13 = arith.constant 0 : index
    %c0_14 = arith.constant 0 : index
    %27 = vector.load %arg5[%c0_13, %c0_14] : memref<1x32xf32, #tpu.memory_space<vmem>>, vector<1x32xf32>
    %28 = vector.shape_cast %27 : vector<1x32xf32> to vector<1x1x32xf32>
    %29 = vector.broadcast %28 : vector<1x1x32xf32> to vector<2x8x32xf32>
    %30 = arith.addf %26, %29 : vector<2x8x32xf32>
    %c0_15 = arith.constant 0 : index
    %c0_16 = arith.constant 0 : index
    %c0_17 = arith.constant 0 : index
    %31 = vector.load %arg6[%c0_15, %c0_16, %c0_17] : memref<2x8x32xf32, #tpu.memory_space<vmem>>, vector<2x8x32xf32>
    tpu.vector_store %arg6[%c0_15, %c0_16, %c0_17], %30 {strides = array<i32>} : memref<2x8x32xf32, #tpu.memory_space<vmem>>, vector<2x8x32xf32>,
    return
  }
  func.func @transform_0(%arg0: i32) -> (i32, i32, i32) {
    %c0_i32 = arith.constant 0 : i32
    %c0_i32_0 = arith.constant 0 : i32
    %c0_i32_1 = arith.constant 0 : i32
    return %arg0, %c0_i32, %c0_i32_0 : i32, i32, i32
  }
  func.func @transform_1(%arg0: i32) -> (i32, i32, i32) {
    %c0_i32 = arith.constant 0 : i32
    %c0_i32_0 = arith.constant 0 : i32
    %c0_i32_1 = arith.constant 0 : i32
    return %arg0, %c0_i32, %c0_i32_0 : i32, i32, i32
  }
  func.func @transform_2(%arg0: i32) -> (i32, i32) {
    %c0_i32 = arith.constant 0 : i32
    %c0_i32_0 = arith.constant 0 : i32
    %c0_i32_1 = arith.constant 0 : i32
    return %c0_i32, %c0_i32_0 : i32, i32
  }
  func.func @transform_3(%arg0: i32) -> (i32, i32) {
    %c0_i32 = arith.constant 0 : i32
    %c0_i32_0 = arith.constant 0 : i32
    %c0_i32_1 = arith.constant 0 : i32
    return %c0_i32, %c0_i32_0 : i32, i32
  }
  func.func @transform_4(%arg0: i32) -> (i32, i32) {
    %c0_i32 = arith.constant 0 : i32
    %c0_i32_0 = arith.constant 0 : i32
    %c0_i32_1 = arith.constant 0 : i32
    return %c0_i32, %c0_i32_0 : i32, i32
  }
  func.func @transform_5(%arg0: i32) -> (i32, i32, i32) {
    %c0_i32 = arith.constant 0 : i32
    %c0_i32_0 = arith.constant 0 : i32
    %c0_i32_1 = arith.constant 0 : i32
    return %arg0, %c0_i32, %c0_i32_0 : i32, i32, i32
  }
}

</mosaic_0001>

<llo_original>
// kernel: tpu_custom_call.1
$region0: #{tpu_custom_call.1}
  #allocation0 [shape = 'u32[]', space=smem, size = 0x4, offset = 0x4, fixed_abs, tag = 'smem constant byte address 0x4 - core index']
  #allocation1 [shape = 'u32[144,128]{1,0:T(1,128)}', space=vmem, size = 0x12000, scoped, tag = 'internal scratch']
  %s0 = inlined_call_operand.hbm [shape: f32[2,8,32], index: 0, kind: input, shape index: {}]
  %s1 = inlined_call_operand.hbm [shape: f32[2,8,32], index: 1, kind: input, shape index: {}]
  %s2 = inlined_call_operand.hbm [shape: f32[8,32], index: 2, kind: input, shape index: {}]
  %s3 = inlined_call_operand.vmem [shape: f32[1,32], index: 3, kind: input, shape index: {}]
  %s4 = inlined_call_operand.vmem [shape: f32[1,32], index: 4, kind: input, shape index: {}]
  %s5 = inlined_call_operand.hbm [shape: f32[2,8,32], index: 5, kind: output, shape index: {}]
  %s6 = sld [smem:[#allocation0]]
  $region42: #{tpu_custom_call.1} parent=0
    _
  %s8 = ssub.s32 1, %s6
  %s9 = scalar_select 0, %s8, %s6
  $region1: #{tpu_custom_call.1} parent=0
    #allocation2 [shape = 'u8[8192]{0}', space=vmem, size = 0x2000, scoped, tag = 'input window, operand 0, single buffered']
    #allocation3 [shape = 's32[1]{0}', space=sflag, size = 0x4, scoped, tag = 'scoped memory for tpu_custom_call.1']
    #allocation4 [shape = 's32[1]{0}', space=sflag, size = 0x4, scoped, tag = 'scoped memory for tpu_custom_call.1']
    #allocation5 [shape = 'u8[8192]{0}', space=vmem, size = 0x2000, scoped, tag = 'input window, operand 1, single buffered']
    #allocation6 [shape = 's32[1]{0}', space=sflag, size = 0x4, scoped, tag = 'scoped memory for tpu_custom_call.1']
    #allocation7 [shape = 'u8[4096]{0}', space=vmem, size = 0x1000, scoped, tag = 'input window, operand 2, single buffered']
    #allocation8 [shape = 'u8[8192]{0}', space=vmem, size = 0x2000, scoped, tag = 'output window, operand 0, single buffered']
    %10 = vsyncpa [#allocation3], 0
    %11 = vsyncpa [#allocation6], 0
    %12 = vsyncpa [#allocation4], 0
    // Predicated region
    $region2: #{tpu_custom_call.1} parent=1 // pred_check
      _
    $region3: #{tpu_custom_call.1} parent=1 // pred_check_branch
      %14 = sbr.rel (0) target = $region5
    $region4: #{tpu_custom_call.1} parent=1 // pred_region
      %s16 = ssub.s32 256, 256
      %17 = vsyncadd [#allocation3], %s16
      %s18 = sshll.u32 [#allocation2], 4
      %s19 = int_to_ptr.vmem [resolvable:$true] %s18
      %24 = dma.hbm_to_vmem [thread:$0]  %s0, 256, %s19, [#allocation3], 128, 128, 8
    $region5: #{tpu_custom_call.1} parent=1 // pred_fallthru
      _
    // Predicated region
    $region6: #{tpu_custom_call.1} parent=1 // pred_check
      _
    $region7: #{tpu_custom_call.1} parent=1 // pred_check_branch
      %26 = sbr.rel (0) target = $region9
    $region8: #{tpu_custom_call.1} parent=1 // pred_region
      %s28 = ssub.s32 256, 256
      %29 = vsyncadd [#allocation6], %s28
      %s30 = sshll.u32 [#allocation5], 4
      %s31 = int_to_ptr.vmem [resolvable:$true] %s30
      %36 = dma.hbm_to_vmem [thread:$0]  %s1, 256, %s31, [#allocation6], 128, 128, 8
    $region9: #{tpu_custom_call.1} parent=1 // pred_fallthru
      _
    // Predicated region
    $region10: #{tpu_custom_call.1} parent=1 // pred_check
      _
    $region11: #{tpu_custom_call.1} parent=1 // pred_check_branch
      %38 = sbr.rel (0) target = $region13
    $region12: #{tpu_custom_call.1} parent=1 // pred_region
      %s40 = ssub.s32 128, 128
      %41 = vsyncadd [#allocation6], %s40
      %s43 = sshll.u32 [#allocation7], 4
      %s44 = int_to_ptr.vmem [resolvable:$true] %s43
      %46 = dma.hbm_to_vmem [thread:$0]  %s2, 128, %s44, [#allocation6]
    $region13: #{tpu_custom_call.1} parent=1 // pred_fallthru
      _
    // Predicated region
    $region14: #{tpu_custom_call.1} parent=1 // pred_check
      _
    $region15: #{tpu_custom_call.1} parent=1 // pred_check_branch
      %48 = sbr.rel (0) target = $region17
    $region16: #{tpu_custom_call.1} parent=1 // pred_region
      _
    $region17: #{tpu_custom_call.1} parent=1 // pred_fallthru
      _
    // Predicated region
    $region18: #{tpu_custom_call.1} parent=1 // pred_check
      _
    $region19: #{tpu_custom_call.1} parent=1 // pred_check_branch
      %50 = sbr.rel (0) target = $region21
    $region20: #{tpu_custom_call.1} parent=1 // pred_region
      _
    $region21: #{tpu_custom_call.1} parent=1 // pred_fallthru
      _
    // Predicated region
    $region22: #{tpu_custom_call.1} parent=1 // pred_check
      _
    $region23: #{tpu_custom_call.1} parent=1 // pred_check_branch
      %52 = sbr.rel (0) target = $region25
    $region24: #{tpu_custom_call.1} parent=1 // pred_region
      %53 = dma.done [#allocation3], 256
    $region25: #{tpu_custom_call.1} parent=1 // pred_fallthru
      _
    // Predicated region
    $region26: #{tpu_custom_call.1} parent=1 // pred_check
      _
    $region27: #{tpu_custom_call.1} parent=1 // pred_check_branch
      %55 = sbr.rel (0) target = $region29
    $region28: #{tpu_custom_call.1} parent=1 // pred_region
      %56 = dma.done [#allocation6], 256
    $region29: #{tpu_custom_call.1} parent=1 // pred_fallthru
      _
    // Predicated region
    $region30: #{tpu_custom_call.1} parent=1 // pred_check
      _
    $region31: #{tpu_custom_call.1} parent=1 // pred_check_branch
      %58 = sbr.rel (0) target = $region33
    $region32: #{tpu_custom_call.1} parent=1 // pred_region
      %59 = dma.done [#allocation6], 128
    $region33: #{tpu_custom_call.1} parent=1 // pred_fallthru
      _
    %v60 = vld [vmem:[#allocation2] sm:$0xff]
    %v61 = vld [vmem:[#allocation2 + $0x8] sm:$0xff]
    %v62 = vld [vmem:[#allocation5] sm:$0xff]
    %v63 = vld [vmem:[#allocation5 + $0x8] sm:$0xff]
    %v64 = vadd.f32 %v60, %v62
    %v65 = vadd.f32 %v61, %v63
    %v66 = vld [vmem:[#allocation7] sm:$0xff]
    %v67 = vadd.f32 %v64, %v66
    %v68 = vadd.f32 %v65, %v66
    %vm69 = vcmask 261120
    %v70 = vsel %vm69, %v67, 0.0
    %71 = vadd.xlane.f32.xlu0 %v70
    %v72 = vpop.xlane.xlu0 %71
    %v73 = vsel %vm69, %v68, 0.0
    %74 = vadd.xlane.f32.xlu0 %v73
    %v75 = vpop.xlane.xlu0 %74
    %v76 = vrcp.pop 32.0
    %v77 = vmul.f32 %v72, %v76
    %v78 = vmul.f32 %v75, %v76
    %v79 = vsub.f32 %v67, %v77
    %v80 = vsub.f32 %v68, %v78
    %v81 = vmul.f32 %v79, %v79
    %v82 = vmul.f32 %v80, %v80
    %v83 = vsel %vm69, %v81, 0.0
    %84 = vadd.xlane.f32.xlu0 %v83
    %v85 = vpop.xlane.xlu0 %84
    %v86 = vsel %vm69, %v82, 0.0
    %87 = vadd.xlane.f32.xlu0 %v86
    %v88 = vpop.xlane.xlu0 %87
    %v89 = vmul.f32 %v85, %v76
    %v90 = vmul.f32 %v88, %v76
    %v91 = vadd.f32 %v89, 1e-12
    %v92 = vadd.f32 %v90, 1e-12
    %v93 = vrsqrt.pop %v91
    %v94 = vrsqrt.pop %v92
    %v95 = vmul.f32 %v79, %v93
    %v96 = vmul.f32 %v80, %v94
    %v97 = vld [vmem:[%s3] sm:$0x1]
    %v99 = vlaneseq
    %v100 = vshrl.u32 %v99, 7
    %v101 = vsub.s32 0, %v100
    %v102 = vrot.slane %v97, %v101
    %v104 = vmul.f32 %v95, %v102
    %v105 = vmul.f32 %v96, %v102
    %v106 = vld [vmem:[%s4] sm:$0x1]
    %v108 = vlaneseq
    %v109 = vshrl.u32 %v108, 7
    %v110 = vsub.s32 0, %v109
    %v111 = vrot.slane %v106, %v110
    %v113 = vadd.f32 %v104, %v111
    %v114 = vadd.f32 %v105, %v111
    %115 = vst.msk [vmem:[#allocation8] sm:$0xff] %vm69, %v113
    %116 = vst.msk [vmem:[#allocation8 + $0x8] sm:$0xff] %vm69, %v114
    // Predicated region
    $region34: #{tpu_custom_call.1} parent=1 // pred_check
      _
    $region35: #{tpu_custom_call.1} parent=1 // pred_check_branch
      %118 = sbr.rel (0) target = $region37
    $region36: #{tpu_custom_call.1} parent=1 // pred_region
      %s120 = ssub.s32 256, 256
      %121 = vsyncadd [#allocation4], %s120
      %s122 = sshll.u32 [#allocation8], 4
      %s123 = int_to_ptr.vmem [resolvable:$true] %s122
      %128 = dma.vmem_to_hbm [thread:$0]  %s123, 256, %s5, [#allocation4], 128, 128, 8
    $region37: #{tpu_custom_call.1} parent=1 // pred_fallthru
      _
    // Predicated region
    $region38: #{tpu_custom_call.1} parent=1 // pred_check
      _
    $region39: #{tpu_custom_call.1} parent=1 // pred_check_branch
      %130 = sbr.rel (0) target = $region41
    $region40: #{tpu_custom_call.1} parent=1 // pred_region
      %131 = dma.done [#allocation4], 256
    $region41: #{tpu_custom_call.1} parent=1 // pred_fallthru
      _
    %132 = vsyncpa [#allocation3], 1
    %133 = vsyncpa [#allocation6], 1
    %134 = vsyncpa [#allocation4], 1

</llo_original>
